<compile_context>
chip_gen: v6e
topology: v6e:2x2x1
jax: 0.10.0
libtpu: 0.0.40
codegen_flags: <defaults>
</compile_context>

<pallas_src>
import jax
import jax.numpy as jnp
from jax.experimental import pallas as pl
from jax.experimental.pallas import tpu as pltpu


def _weighted_sum_kernel(x1_ref, x2_ref, x3_ref, w_ref, o_ref):
    # x1_ref/x2_ref/x3_ref: (6, 3) f32 in VMEM (pure metadata reshape of (1,2,3,3))
    # w_ref               : (1, 3) f32 in VMEM (weight row)
    # o_ref               : (1, 1) f32 in SMEM (scalar result)
    s = x1_ref[...] + x2_ref[...] + x3_ref[...]        # VPU: 2 adds on one vreg
    col = jnp.sum(s, axis=0, keepdims=True)            # XLU: sublane reduce -> (1, 3)
    o_ref[0, 0] = jnp.sum(col * w_ref[...])            # VPU mul + XLU lane reduce


def model_forward(x1, x2, x3, weight):
    """Pallas implementation of Model(WeightedSumLinear(weight)).forward(x1, x2, x3).

    Returns a scalar (0-d) float32, matching the PyTorch module.
    """
    w = weight.astype(jnp.float32).reshape(1, -1)       # (1, 3)  -- free reshape
    n_w = w.shape[1]
    # (1, 2, 3, 3) -> (6, 3): contiguous flattening of leading dims, pure metadata.
    a = x1.astype(jnp.float32).reshape(-1, n_w)
    b = x2.astype(jnp.float32).reshape(-1, n_w)
    c = x3.astype(jnp.float32).reshape(-1, n_w)

    out = pl.pallas_call(
        _weighted_sum_kernel,
        out_shape=jax.ShapeDtypeStruct((1, 1), jnp.float32),
        in_specs=[
            pl.BlockSpec(memory_space=pltpu.MemorySpace.VMEM),  # x1 slab (full array)
            pl.BlockSpec(memory_space=pltpu.MemorySpace.VMEM),  # x2 slab
            pl.BlockSpec(memory_space=pltpu.MemorySpace.VMEM),  # x3 slab
            pl.BlockSpec(memory_space=pltpu.MemorySpace.VMEM),  # weight row
        ],
        out_specs=pl.BlockSpec(memory_space=pltpu.MemorySpace.SMEM),
        cost_estimate=pl.CostEstimate(
            flops=108, transcendentals=0, bytes_accessed=232),
    )(a, b, c, w)
    return out.reshape(())


if __name__ == "__main__":
    key = jax.random.PRNGKey(0)
    k1, k2, k3 = jax.random.split(key, 3)

    # Shapes implied by the module: x1, x2, x3 are (1, 2, 3, 3); weight is (3,)
    x1 = jax.random.normal(k1, (1, 2, 3, 3), dtype=jnp.float32)
    x2 = jax.random.normal(k2, (1, 2, 3, 3), dtype=jnp.float32)
    x3 = jax.random.normal(k3, (1, 2, 3, 3), dtype=jnp.float32)
    weight = jnp.array([1.0, 2.0, 3.0], dtype=jnp.float32)  # module's parameter

    result = model_forward(x1, x2, x3, weight)
    jax.block_until_ready(result)

    # Reference check in plain JAX (same semantics as the PyTorch module)
    ref = jnp.sum(x1 * weight) + jnp.sum(x2 * weight) + jnp.sum(x3 * weight)
    assert jnp.allclose(result, ref, rtol=1e-5, atol=1e-5), (result, ref)

    print("KERNEL_OK")
</pallas_src>

<mosaic_0001>
module attributes {stable_mosaic.version = 11 : i64} {
  func.func @_weighted_sum_kernel(%arg0: memref<6x3xf32, #tpu.memory_space<vmem>>, %arg1: memref<6x3xf32, #tpu.memory_space<vmem>>, %arg2: memref<6x3xf32, #tpu.memory_space<vmem>>, %arg3: memref<1x3xf32, #tpu.memory_space<vmem>>, %arg4: memref<1x1xf32, #tpu.memory_space<smem>>) attributes {dimension_semantics = [], scalar_prefetch = 0 : i64, scratch_operands = 0 : i64, tpu.core_type = #tpu.core_type<tc>} {
    %c0 = arith.constant 0 : index
    %c0_0 = arith.constant 0 : index
    %0 = vector.load %arg0[%c0, %c0_0] : memref<6x3xf32, #tpu.memory_space<vmem>>, vector<6x3xf32>
    %c0_1 = arith.constant 0 : index
    %c0_2 = arith.constant 0 : index
    %1 = vector.load %arg1[%c0_1, %c0_2] : memref<6x3xf32, #tpu.memory_space<vmem>>, vector<6x3xf32>
    %2 = arith.addf %0, %1 : vector<6x3xf32>
    %c0_3 = arith.constant 0 : index
    %c0_4 = arith.constant 0 : index
    %3 = vector.load %arg2[%c0_3, %c0_4] : memref<6x3xf32, #tpu.memory_space<vmem>>, vector<6x3xf32>
    %4 = arith.addf %2, %3 : vector<6x3xf32>
    %cst = arith.constant dense<0.000000e+00> : vector<3xf32>
    %5 = vector.multi_reduction <add>, %4, %cst [0] : vector<6x3xf32> to vector<3xf32>
    %6 = vector.shape_cast %5 : vector<3xf32> to vector<1x3xf32>
    %c0_5 = arith.constant 0 : index
    %c0_6 = arith.constant 0 : index
    %7 = vector.load %arg3[%c0_5, %c0_6] : memref<1x3xf32, #tpu.memory_space<vmem>>, vector<1x3xf32>
    %8 = arith.mulf %6, %7 : vector<1x3xf32>
    %9 = vector.shape_cast %8 : vector<1x3xf32> to vector<1x1x3xf32>
    %cst_7 = arith.constant dense<0.000000e+00> : vector<1xf32>
    %10 = vector.multi_reduction <add>, %9, %cst_7 [1, 2] : vector<1x1x3xf32> to vector<1xf32>
    %11 = vector.shape_cast %10 : vector<1xf32> to vector<1x1x1xf32>
    %12 = vector.extract %11[0, 0, 0] : f32 from vector<1x1x1xf32>
    %c0_8 = arith.constant 0 : index
    %c0_9 = arith.constant 0 : index
    %13 = memref.load %arg4[%c0_8, %c0_9] : memref<1x1xf32, #tpu.memory_space<smem>>
    memref.store %12, %arg4[%c0_8, %c0_9] : memref<1x1xf32, #tpu.memory_space<smem>>
    return
  }
}

</mosaic_0001>

<llo_original>
// kernel: tpu_custom_call.1
$region0: #{tpu_custom_call.1}
  #allocation0 [shape = 'u32[]', space=smem, size = 0x4, offset = 0x4, fixed_abs, tag = 'smem constant byte address 0x4 - core index']
  #allocation1 [shape = 'u32[144,128]{1,0:T(1,128)}', space=vmem, size = 0x12000, scoped, tag = 'internal scratch']
  %s0 = inlined_call_operand.vmem [shape: f32[6,3], index: 0, kind: input, shape index: {}]
  %s1 = inlined_call_operand.vmem [shape: f32[6,3], index: 1, kind: input, shape index: {}]
  %s2 = inlined_call_operand.vmem [shape: f32[6,3], index: 2, kind: input, shape index: {}]
  %s3 = inlined_call_operand.vmem [shape: f32[1,3], index: 3, kind: input, shape index: {}]
  %s4 = inlined_call_operand.hbm [shape: f32[1,1], index: 4, kind: output, shape index: {}]
  %s5 = sld [smem:[#allocation0]]
  $region26: #{tpu_custom_call.1} parent=0
    _
  %s7 = ssub.s32 1, %s5
  %s8 = scalar_select 0, %s7, %s5
  $region1: #{tpu_custom_call.1} parent=0
    #allocation2 [shape = 'u8[512]{0}', space=smem, size = 0x200, scoped, tag = 'output window, operand 0, single buffered']
    #allocation3 [shape = 's32[1]{0}', space=sflag, size = 0x4, scoped, tag = 'scoped memory for tpu_custom_call.1']
    %9 = vsyncpa [#allocation3], 0
    // Predicated region
    $region2: #{tpu_custom_call.1} parent=1 // pred_check
      _
    $region3: #{tpu_custom_call.1} parent=1 // pred_check_branch
      %11 = sbr.rel (0) target = $region5
    $region4: #{tpu_custom_call.1} parent=1 // pred_region
      _
    $region5: #{tpu_custom_call.1} parent=1 // pred_fallthru
      _
    // Predicated region
    $region6: #{tpu_custom_call.1} parent=1 // pred_check
      _
    $region7: #{tpu_custom_call.1} parent=1 // pred_check_branch
      %13 = sbr.rel (0) target = $region9
    $region8: #{tpu_custom_call.1} parent=1 // pred_region
      _
    $region9: #{tpu_custom_call.1} parent=1 // pred_fallthru
      _
    // Predicated region
    $region10: #{tpu_custom_call.1} parent=1 // pred_check
      _
    $region11: #{tpu_custom_call.1} parent=1 // pred_check_branch
      %15 = sbr.rel (0) target = $region13
    $region12: #{tpu_custom_call.1} parent=1 // pred_region
      _
    $region13: #{tpu_custom_call.1} parent=1 // pred_fallthru
      _
    // Predicated region
    $region14: #{tpu_custom_call.1} parent=1 // pred_check
      _
    $region15: #{tpu_custom_call.1} parent=1 // pred_check_branch
      %17 = sbr.rel (0) target = $region17
    $region16: #{tpu_custom_call.1} parent=1 // pred_region
      _
    $region17: #{tpu_custom_call.1} parent=1 // pred_fallthru
      _
    %v18 = vld [vmem:[%s0] sm:$0x3f]
    %v19 = vld [vmem:[%s1] sm:$0x3f]
    %v20 = vadd.f32 %v18, %v19
    %v21 = vld [vmem:[%s2] sm:$0x3f]
    %v22 = vadd.f32 %v20, %v21
    %vm23 = vcmask 21504
    %v24 = vsel %vm23, %v22, 0.0
    %v25 = vrot.slane %v24, 4
    %v26 = vadd.f32 %v24, %v25
    %v27 = vrot.slane %v26, 2
    %v28 = vadd.f32 %v26, %v27
    %v29 = vrot.slane %v28, 1
    %v30 = vadd.f32 %v28, %v29
    %v31 = vld [vmem:[%s3] sm:$0x1]
    %v32 = vmul.f32 %v30, %v31
    %vm33 = vcmask 16384
    %v34 = vsel %vm33, %v32, 0.0
    %35 = vadd.xlane.f32.xlu0 %v34
    %v36 = vpop.xlane.xlu0 %35
    %v37 = vrot.slane %v36, 4
    %v38 = vadd.f32 %v36, %v37
    %v39 = vrot.slane %v38, 2
    %v40 = vadd.f32 %v38, %v39
    %v41 = vrot.slane %v40, 1
    %v42 = vadd.f32 %v40, %v41
    %s43 = vtos %v42
    %s44 = scalar_lea.smem [#allocation2], 0
    %45 = sst [smem:[%s44]] %s43
    // Predicated region
    $region18: #{tpu_custom_call.1} parent=1 // pred_check
      _
    $region19: #{tpu_custom_call.1} parent=1 // pred_check_branch
      %47 = sbr.rel (0) target = $region21
    $region20: #{tpu_custom_call.1} parent=1 // pred_region
      %s49 = ssub.s32 16, 16
      %50 = vsyncadd [#allocation3], %s49
      %53 = dma.smem_to_hbm [#allocation2], 16, %s4, [#allocation3]
    $region21: #{tpu_custom_call.1} parent=1 // pred_fallthru
      _
    // Predicated region
    $region22: #{tpu_custom_call.1} parent=1 // pred_check
      _
    $region23: #{tpu_custom_call.1} parent=1 // pred_check_branch
      %55 = sbr.rel (0) target = $region25
    $region24: #{tpu_custom_call.1} parent=1 // pred_region
      %56 = dma.done [#allocation3], 16
    $region25: #{tpu_custom_call.1} parent=1 // pred_fallthru
      _
    %57 = sfence
    %58 = vsyncpa [#allocation3], 1

</llo_original>
